<compile_context>
chip_gen: v6e
topology: v6e:2x2x1
jax: 0.10.0
libtpu: 0.0.40
codegen_flags: <defaults>
</compile_context>

<pallas_src>
import functools

import jax
import jax.numpy as jnp
from jax.experimental import pallas as pl
from jax.experimental.pallas import tpu as pltpu


# ---------------------------------------------------------------------------
# kernel
# ---------------------------------------------------------------------------
def _make_sdpa_kernel(has_mask, return_attention, scale, mxu_dtype):
    def kernel(*refs):
        if has_mask:
            q_ref, k_ref, v_ref, mask_ref = refs[0], refs[1], refs[2], refs[3]
            out_refs = refs[4:]
        else:
            q_ref, k_ref, v_ref = refs[0], refs[1], refs[2]
            mask_ref = None
            out_refs = refs[3:]
        if return_attention:
            ctx_ref, attn_ref = out_refs
        else:
            (ctx_ref,) = out_refs
            attn_ref = None

        q = q_ref[0]          # (block_q, D)
        k = k_ref[0]          # (Lk, D)
        v = v_ref[0]          # (Lk, Dv)

        # Fold scale into q: block_q*D multiplies instead of block_q*Lk.
        # `if scale:` matches the torch module (scaling skipped for 0/None).
        if scale:
            q = q * jnp.asarray(scale, dtype=q.dtype)

        if mxu_dtype is not None:
            q = q.astype(mxu_dtype)
            k = k.astype(mxu_dtype)

        # scores = q @ k^T, contracting the last dim of BOTH operands so the
        # MXU gets the transposed-RHS form directly (no XLU transpose of k).
        s = jax.lax.dot_general(
            q, k,
            dimension_numbers=(((1,), (1,)), ((), ())),
            preferred_element_type=jnp.float32,
        )

        if mask_ref is not None:
            masked = mask_ref[0] != 0
            # Large finite sentinel instead of -inf (no NaN for fully masked
            # rows); masked probabilities are zeroed explicitly after exp.
            s = jnp.where(masked, jnp.float32(-1e30), s)

        # softmax over the key axis (torch Softmax(dim=2)), math in f32
        m = jnp.max(s, axis=-1, keepdims=True)
        p = jnp.exp(s - m)
        if mask_ref is not None:
            p = jnp.where(masked, jnp.float32(0.0), p)
        denom = jnp.sum(p, axis=-1, keepdims=True)
        # approx reciprocal -> EUP slot (otherwise idle here)
        attn = p * pl.reciprocal(denom, approx=True)

        if attn_ref is not None:
            attn_ref[0] = attn.astype(attn_ref.dtype)

        pv_dtype = mxu_dtype if mxu_dtype is not None else v.dtype
        ctx = jnp.dot(attn.astype(pv_dtype), v.astype(pv_dtype),
                      preferred_element_type=jnp.float32)
        ctx_ref[0] = ctx.astype(ctx_ref.dtype)

    return kernel


# ---------------------------------------------------------------------------
# tile sizing / VMEM budgeting
# ---------------------------------------------------------------------------
def _block_vmem_bytes(block_q, Lk, D, Dv, has_mask, return_attention, itemsize):
    # double-buffered blocks (pipeline depth 2) + one f32 score intermediate
    n = 2 * block_q * D * itemsize                      # q
    n += 2 * Lk * D * itemsize + 2 * Lk * Dv * itemsize  # k, v (resident per b)
    n += 2 * block_q * Dv * itemsize                     # ctx out
    if return_attention:
        n += 2 * block_q * Lk * itemsize                 # attn out
    if has_mask:
        n += 2 * block_q * Lk                            # int8 mask
    n += block_q * Lk * 4                                # f32 scores / probs
    return n


def _pick_block_q(Lq, Lk, D, Dv, has_mask, return_attention, itemsize,
                  budget_bytes=40 * 1024 * 1024):
    # Largest tile that fits the budget.  With an int8 mask keep the sublane
    # count a multiple of 32 (or the full Lq) for packed-layout friendliness.
    cands = [c for c in (1024, 512, 256, 128, 64, 32, 16, 8) if Lq % c == 0]
    if has_mask:
        cands = [c for c in cands if c % 32 == 0]
    cands = [Lq] + cands if Lq not in cands else cands
    cands = sorted(set(cands), reverse=True)
    for c in cands:
        if _block_vmem_bytes(c, Lk, D, Dv, has_mask, return_attention,
                             itemsize) <= budget_bytes:
            return c
    return cands[-1]


# ---------------------------------------------------------------------------
# wrapper
# ---------------------------------------------------------------------------
def scaled_dot_product_attention(q, k, v, scale=None, attn_mask=None, *,
                                 block_q=None, return_attention=True,
                                 mxu_dtype=None):
    """Pallas equivalent of ScaledDotProductAttention.forward (dropout p=0).

    Returns (context, attention); attention is None when
    return_attention=False (skips the (B, Lq, Lk) HBM writeback).
    For best store performance keep Lk and Dv multiples of 128 (lane-dense).
    On v6e/v7x pass mxu_dtype=jnp.bfloat16 to run the two matmuls in bf16
    (softmax math stays f32); default None matches the torch f32 numerics.
    """
    B, Lq, D = q.shape
    Bk, Lk, Dk = k.shape
    Bv, Lkv, Dv = v.shape
    assert D == Dk and Bk == B and Bv == B and Lkv == Lk

    has_mask = attn_mask is not None
    itemsize = jnp.dtype(q.dtype).itemsize

    if block_q is None:
        block_q = _pick_block_q(Lq, Lk, D, Dv, has_mask, return_attention,
                                itemsize)
    assert Lq % block_q == 0, "block_q must divide Lq"
    if has_mask:
        assert block_q == Lq or block_q % 32 == 0, \
            "int8 mask blocks want block_q % 32 == 0 (or full Lq)"
    n_q = Lq // block_q

    kernel = _make_sdpa_kernel(has_mask, return_attention, scale, mxu_dtype)

    # q / outputs are tiled over (b, i); k / v depend only on b, so their
    # block index is constant across the fast i axis (no re-DMA per q tile).
    in_specs = [
        pl.BlockSpec((1, block_q, D), lambda b, i: (b, i, 0)),   # q
        pl.BlockSpec((1, Lk, D), lambda b, i: (b, 0, 0)),        # k
        pl.BlockSpec((1, Lk, Dv), lambda b, i: (b, 0, 0)),       # v
    ]
    args = [q, k, v]
    if has_mask:
        in_specs.append(pl.BlockSpec((1, block_q, Lk), lambda b, i: (b, i, 0)))
        args.append(attn_mask.astype(jnp.int8))  # narrow dtype, no f32 upcast

    ctx_shape = jax.ShapeDtypeStruct((B, Lq, Dv), q.dtype)
    ctx_spec = pl.BlockSpec((1, block_q, Dv), lambda b, i: (b, i, 0))
    if return_attention:
        out_shape = (ctx_shape, jax.ShapeDtypeStruct((B, Lq, Lk), q.dtype))
        out_specs = (ctx_spec,
                     pl.BlockSpec((1, block_q, Lk), lambda b, i: (b, i, 0)))
    else:
        out_shape = ctx_shape
        out_specs = ctx_spec

    est = _block_vmem_bytes(block_q, Lk, D, Dv, has_mask, return_attention,
                            itemsize)
    # explicit scoped-VMEM limit: generous headroom but capped below v7x's
    # 64 MiB physical VMEM (v5e/v6e have 128 MiB, so this is safe everywhere)
    vmem_limit = int(min(max(2 * est + (4 << 20), 16 << 20), 48 << 20))

    out = pl.pallas_call(
        kernel,
        out_shape=out_shape,
        grid_spec=pltpu.PrefetchScalarGridSpec(
            num_scalar_prefetch=0,
            grid=(B, n_q),
            in_specs=in_specs,
            out_specs=out_specs,
        ),
        compiler_params=pltpu.CompilerParams(
            # every grid step writes a disjoint output block -> both parallel
            dimension_semantics=("parallel", "parallel"),
            vmem_limit_bytes=vmem_limit,
        ),
    )(*args)

    if return_attention:
        context, attention = out
        return context, attention
    return out, None


# ---------------------------------------------------------------------------
# pure-JAX reference (mirrors the torch module)
# ---------------------------------------------------------------------------
def _reference(q, k, v, scale=None, attn_mask=None):
    attention = jnp.einsum("bqd,bkd->bqk", q, k)
    if scale:
        attention = attention * scale
    if attn_mask is not None:
        attention = jnp.where(attn_mask, -jnp.inf, attention)
    attention = jax.nn.softmax(attention, axis=2)
    context = jnp.einsum("bqk,bkd->bqd", attention, v)
    return context, attention


if __name__ == "__main__":
    key = jax.random.PRNGKey(0)
    kq, kk, kv = jax.random.split(key, 3)

    # Shapes consistent with MultiHeadAttention(model_dim=256, num_heads=4):
    # bmm batch = batch_size * num_heads = 2 * 4 = 8, head dim = 64,
    # seq = 128 (multiple of 128 -> lane-dense attention output).
    B, Lq, Lk, D, Dv = 8, 128, 128, 64, 64
    q = jax.random.normal(kq, (B, Lq, D), dtype=jnp.float32)
    k = jax.random.normal(kk, (B, Lk, D), dtype=jnp.float32)
    v = jax.random.normal(kv, (B, Lk, Dv), dtype=jnp.float32)
    scale = (D // 4) ** (-0.5)  # same formula as MultiHeadAttention.forward

    # padding mask (padding_mask()): key positions beyond each valid length
    valid_len = jnp.array([96, 128, 64, 128, 112, 80, 128, 32], dtype=jnp.int32)
    key_pad = jnp.arange(Lk, dtype=jnp.int32)[None, :] >= valid_len[:, None]
    attn_mask = jnp.broadcast_to(key_pad[:, None, :], (B, Lq, Lk))

    # tolerance reflects the approx (EUP) reciprocal in the softmax denominator
    ATOL = RTOL = 1e-2

    # masked path
    ctx, attn = scaled_dot_product_attention(
        q, k, v, scale=scale, attn_mask=attn_mask, block_q=32)
    jax.block_until_ready((ctx, attn))
    ctx_r, attn_r = _reference(q, k, v, scale=scale, attn_mask=attn_mask)
    assert jnp.allclose(ctx, ctx_r, atol=ATOL, rtol=RTOL), "masked context mismatch"
    assert jnp.allclose(attn, attn_r, atol=ATOL, rtol=RTOL), "masked attention mismatch"

    # no-mask path
    ctx2, attn2 = scaled_dot_product_attention(q, k, v, scale=scale, block_q=32)
    jax.block_until_ready((ctx2, attn2))
    ctx2_r, attn2_r = _reference(q, k, v, scale=scale)
    assert jnp.allclose(ctx2, ctx2_r, atol=ATOL, rtol=RTOL), "context mismatch"
    assert jnp.allclose(attn2, attn2_r, atol=ATOL, rtol=RTOL), "attention mismatch"

    # context-only path (drops the (B, Lq, Lk) attention writeback)
    ctx3, none_attn = scaled_dot_product_attention(
        q, k, v, scale=scale, attn_mask=attn_mask, return_attention=False)
    jax.block_until_ready(ctx3)
    assert none_attn is None
    assert jnp.allclose(ctx3, ctx_r, atol=ATOL, rtol=RTOL), "ctx-only mismatch"

    print("KERNEL_OK")
</pallas_src>

<mosaic_0001>
module attributes {stable_mosaic.version = 11 : i64} {
  func.func @kernel(%arg0: i32, %arg1: i32, %arg2: memref<1x32x64xf32, #tpu.memory_space<vmem>>, %arg3: memref<1x128x64xf32, #tpu.memory_space<vmem>>, %arg4: memref<1x128x64xf32, #tpu.memory_space<vmem>>, %arg5: memref<1x32x128xi8, #tpu.memory_space<vmem>>, %arg6: memref<1x32x64xf32, #tpu.memory_space<vmem>>, %arg7: memref<1x32x128xf32, #tpu.memory_space<vmem>>) attributes {dimension_semantics = [#tpu.dimension_semantics<parallel>, #tpu.dimension_semantics<parallel>], iteration_bounds = array<i64: 8, 4>, scalar_prefetch = 0 : i64, scratch_operands = 0 : i64, tpu.core_type = #tpu.core_type<tc>, window_params = [{transform_indices = @transform_0, window_bounds = array<i64: 1, 32, 64>}, {transform_indices = @transform_1, window_bounds = array<i64: 1, 128, 64>}, {transform_indices = @transform_2, window_bounds = array<i64: 1, 128, 64>}, {transform_indices = @transform_3, window_bounds = array<i64: 1, 32, 128>}, {transform_indices = @transform_4, window_bounds = array<i64: 1, 32, 64>}, {transform_indices = @transform_5, window_bounds = array<i64: 1, 32, 128>}]} {
    %c0 = arith.constant 0 : index
    %c0_0 = arith.constant 0 : index
    %c0_1 = arith.constant 0 : index
    %0 = vector.load %arg2[%c0, %c0_0, %c0_1] : memref<1x32x64xf32, #tpu.memory_space<vmem>>, vector<1x32x64xf32>
    %1 = vector.shape_cast %0 : vector<1x32x64xf32> to vector<32x64xf32>
    %c0_2 = arith.constant 0 : index
    %c0_3 = arith.constant 0 : index
    %c0_4 = arith.constant 0 : index
    %2 = vector.load %arg3[%c0_2, %c0_3, %c0_4] : memref<1x128x64xf32, #tpu.memory_space<vmem>>, vector<1x128x64xf32>
    %3 = vector.shape_cast %2 : vector<1x128x64xf32> to vector<128x64xf32>
    %c0_5 = arith.constant 0 : index
    %c0_6 = arith.constant 0 : index
    %c0_7 = arith.constant 0 : index
    %4 = vector.load %arg4[%c0_5, %c0_6, %c0_7] : memref<1x128x64xf32, #tpu.memory_space<vmem>>, vector<1x128x64xf32>
    %5 = vector.shape_cast %4 : vector<1x128x64xf32> to vector<128x64xf32>
    %cst = arith.constant 2.500000e-01 : f32
    %6 = vector.broadcast %cst : f32 to vector<32x64xf32>
    %7 = arith.mulf %1, %6 : vector<32x64xf32>
    %cst_8 = arith.constant dense<0.000000e+00> : vector<32x128xf32>
    %8 = tpu.matmul %7, %3, %cst_8 {dimension_numbers = #tpu.dot_dimension_numbers<[1], [1], [0], [0], [0, 0, 1, 0], [], []>} : vector<32x64xf32>, vector<128x64xf32>, vector<32x128xf32> -> vector<32x128xf32>
    %c0_9 = arith.constant 0 : index
    %c0_10 = arith.constant 0 : index
    %c0_11 = arith.constant 0 : index
    %9 = vector.load %arg5[%c0_9, %c0_10, %c0_11] : memref<1x32x128xi8, #tpu.memory_space<vmem>>, vector<1x32x128xi8>
    %10 = vector.shape_cast %9 : vector<1x32x128xi8> to vector<32x128xi8>
    %c0_i8 = arith.constant 0 : i8
    %11 = vector.broadcast %c0_i8 : i8 to vector<32x128xi8>
    %12 = arith.cmpi ne, %10, %11 : vector<32x128xi8>
    %cst_12 = arith.constant -1.000000e+30 : f32
    %13 = vector.broadcast %cst_12 : f32 to vector<32x128xf32>
    %14 = arith.select %12, %13, %8 : vector<32x128xi1>, vector<32x128xf32>
    %cst_13 = arith.constant dense<0xFF800000> : vector<32xf32>
    %15 = vector.multi_reduction <maximumf>, %14, %cst_13 [1] : vector<32x128xf32> to vector<32xf32>
    %16 = vector.shape_cast %15 : vector<32xf32> to vector<32x1xf32>
    %17 = vector.broadcast %16 : vector<32x1xf32> to vector<32x128xf32>
    %18 = arith.subf %14, %17 : vector<32x128xf32>
    %19 = math.exp %18 : vector<32x128xf32>
    %cst_14 = arith.constant 0.000000e+00 : f32
    %20 = vector.broadcast %cst_14 : f32 to vector<32x128xf32>
    %21 = arith.select %12, %20, %19 : vector<32x128xi1>, vector<32x128xf32>
    %cst_15 = arith.constant dense<0.000000e+00> : vector<32xf32>
    %22 = vector.multi_reduction <add>, %21, %cst_15 [1] : vector<32x128xf32> to vector<32xf32>
    %23 = vector.shape_cast %22 : vector<32xf32> to vector<32x1xf32>
    %24 = tpu.reciprocal %23 {approx = true} : vector<32x1xf32> -> vector<32x1xf32>
    %25 = vector.broadcast %24 : vector<32x1xf32> to vector<32x128xf32>
    %26 = arith.mulf %21, %25 : vector<32x128xf32>
    %c0_16 = arith.constant 0 : index
    %c0_17 = arith.constant 0 : index
    %c0_18 = arith.constant 0 : index
    %27 = vector.load %arg7[%c0_16, %c0_17, %c0_18] : memref<1x32x128xf32, #tpu.memory_space<vmem>>, vector<1x32x128xf32>
    %28 = vector.shape_cast %27 : vector<1x32x128xf32> to vector<32x128xf32>
    %29 = vector.shape_cast %26 : vector<32x128xf32> to vector<1x32x128xf32>
    tpu.vector_store %arg7[%c0_16, %c0_17, %c0_18], %29 {strides = array<i32>} : memref<1x32x128xf32, #tpu.memory_space<vmem>>, vector<1x32x128xf32>,
    %cst_19 = arith.constant dense<0.000000e+00> : vector<32x64xf32>
    %30 = tpu.matmul %26, %5, %cst_19 {dimension_numbers = #tpu.dot_dimension_numbers<[1], [0], [0], [1], [0, 0, 1, 1], [], []>} : vector<32x128xf32>, vector<128x64xf32>, vector<32x64xf32> -> vector<32x64xf32>
    %c0_20 = arith.constant 0 : index
    %c0_21 = arith.constant 0 : index
    %c0_22 = arith.constant 0 : index
    %31 = vector.load %arg6[%c0_20, %c0_21, %c0_22] : memref<1x32x64xf32, #tpu.memory_space<vmem>>, vector<1x32x64xf32>
    %32 = vector.shape_cast %31 : vector<1x32x64xf32> to vector<32x64xf32>
    %33 = vector.shape_cast %30 : vector<32x64xf32> to vector<1x32x64xf32>
    tpu.vector_store %arg6[%c0_20, %c0_21, %c0_22], %33 {strides = array<i32>} : memref<1x32x64xf32, #tpu.memory_space<vmem>>, vector<1x32x64xf32>,
    return
  }
  func.func @transform_0(%arg0: i32, %arg1: i32) -> (i32, i32, i32) {
    %c0_i32 = arith.constant 0 : i32
    %c0_i32_0 = arith.constant 0 : i32
    return %arg0, %arg1, %c0_i32 : i32, i32, i32
  }
  func.func @transform_1(%arg0: i32, %arg1: i32) -> (i32, i32, i32) {
    %c0_i32 = arith.constant 0 : i32
    %c0_i32_0 = arith.constant 0 : i32
    %c0_i32_1 = arith.constant 0 : i32
    return %arg0, %c0_i32, %c0_i32_0 : i32, i32, i32
  }
  func.func @transform_2(%arg0: i32, %arg1: i32) -> (i32, i32, i32) {
    %c0_i32 = arith.constant 0 : i32
    %c0_i32_0 = arith.constant 0 : i32
    %c0_i32_1 = arith.constant 0 : i32
    return %arg0, %c0_i32, %c0_i32_0 : i32, i32, i32
  }
  func.func @transform_3(%arg0: i32, %arg1: i32) -> (i32, i32, i32) {
    %c0_i32 = arith.constant 0 : i32
    %c0_i32_0 = arith.constant 0 : i32
    return %arg0, %arg1, %c0_i32 : i32, i32, i32
  }
  func.func @transform_4(%arg0: i32, %arg1: i32) -> (i32, i32, i32) {
    %c0_i32 = arith.constant 0 : i32
    %c0_i32_0 = arith.constant 0 : i32
    return %arg0, %arg1, %c0_i32 : i32, i32, i32
  }
  func.func @transform_5(%arg0: i32, %arg1: i32) -> (i32, i32, i32) {
    %c0_i32 = arith.constant 0 : i32
    %c0_i32_0 = arith.constant 0 : i32
    return %arg0, %arg1, %c0_i32 : i32, i32, i32
  }
}

</mosaic_0001>

<llo_original>
// kernel: tpu_custom_call.1
$region0: #{tpu_custom_call.1}
  #allocation0 [shape = 'u32[]', space=smem, size = 0x4, offset = 0x4, fixed_abs, tag = 'smem constant byte address 0x4 - core index']
  #allocation1 [shape = 'u32[144,128]{1,0:T(1,128)}', space=vmem, size = 0x12000, scoped, tag = 'internal scratch']
  %s0 = inlined_call_operand.vmem [shape: f32[8,128,64], index: 0, kind: input, shape index: {}]
  %s1 = inlined_call_operand.vmem [shape: f32[8,128,64], index: 1, kind: input, shape index: {}]
  %s2 = inlined_call_operand.vmem [shape: f32[8,128,64], index: 2, kind: input, shape index: {}]
  %s3 = inlined_call_operand.vmem [shape: s8[8,128,128], index: 3, kind: input, shape index: {}]
  %s4 = inlined_call_operand.vmem [shape: f32[8,128,64], index: 4, kind: output, shape index: {0}]
  %s5 = inlined_call_operand.hbm [shape: f32[8,128,128], index: 5, kind: output, shape index: {1}]
  %6 = xla_tuple %s4, %s5
  %s7 = sld [smem:[#allocation0]]
  $region57: #{tpu_custom_call.1} parent=0
    _
  %s9 = ssub.s32 1, %s7
  %s10 = scalar_select 0, %s9, %s7
  $region1: #{tpu_custom_call.1} parent=0
    #allocation2 [shape = 'u8[32768]{0}', space=vmem, size = 0x8000, scoped, tag = 'output window, operand 1']
    #allocation3 [shape = 's32[2]{0}', space=sflag, size = 0x8, scoped, tag = 'scoped memory for tpu_custom_call.1']
    %11 = vsyncpa [#allocation3], 0
    %s12 = scalar_lea.sflag [#allocation3], 1
    %13 = vsyncpa %s12, 0
    loop: start=0, step=1, limit=34
    $region2: #{tpu_custom_call.1} parent=1 // loop_pre_header
      _
    $region3: #{tpu_custom_call.1} parent=1 // loop_header
      %s15 = sphi 0, %s19
      %p16 = scmp.ge.s32.totalorder %s15, 34
      %s22 = sphi 0, %s34
      %s23 = sphi 0, %s30
      %s24 = sphi 0, %s22
      %s25 = sphi 0, %s23
      %s26 = sphi 0, %s24
      %s27 = sphi 0, %s25
      %s39 = sphi 0, %s41
      %s42 = sphi 0, %s39
      %s43 = sphi 0, %s42
      %s59 = sphi 0, %s43
      %s65 = sphi 0, %s67
      %s68 = sphi 0, %s65
      %s69 = sphi 0, %s68
      %s85 = sphi 0, %s69
      %s91 = sphi 0, %s93
      %s94 = sphi 0, %s91
      %s95 = sphi 0, %s94
      %s111 = sphi 0, %s95
      %s119 = sphi 0, %s121
      %s122 = sphi 0, %s119
      %s123 = sphi 0, %s122
      %s139 = sphi 0, %s123
      %s147 = sphi 0, %s149
      %s150 = sphi 0, %s147
      %s151 = sphi 0, %s150
      %s167 = sphi 0, %s151
      %s175 = sphi 0, %s177
      %s178 = sphi 0, %s175
      %s179 = sphi 0, %s178
      %s195 = sphi 0, %s179
    $region4: #{tpu_custom_call.1} parent=1 // loop_header_branch
      %18 = sbr.rel (%p16) target = $region8
    $region5: #{tpu_custom_call.1} parent=1 // loop_body
      %s20 = ssub.s32 %s15, 1
      %s21 = ssub.s32 %s15, 2
      %s28 = sadd.s32 1, %s23
      %p29 = scmp.ge.s32.totalorder %s28, 4
      %s30 = scalar_select %p29, 0, %s28
      %s31 = sadd.s32 1, %s22
      %s32 = scalar_select %p29, %s31, %s22
      %p33 = scmp.ge.s32.totalorder %s32, 8
      %s34 = scalar_select %p33, 0, %s32
      %s35 = ssub.s32 %s22, %s34
      %s36 = ssub.s32 %s23, %s30
      %s37 = sor.u32 %s35, %s36
      %p38 = scmp.eq.s32.totalorder %s37, 0
      %s40 = sadd.s32 %s39, 1
      %s41 = scalar_select %p38, %s39, %s40
      %p44 = pneg %p38
      %p45 = scmp.eq.s32.totalorder %s15, 31
      %p46 = por %p44, %p45
      %p47 = scmp.ne.s32.totalorder %s39, %s42
      %p48 = scmp.eq.s32.totalorder %s15, 0
      %p49 = por %p47, %p48
      %p50 = scmp.ne.s32.totalorder %s39, %s42
      %p51 = scmp.eq.s32.totalorder %s20, 31
      %p52 = por %p50, %p51
      %p53 = scmp.ne.s32.totalorder %s42, %s43
      %p54 = scmp.eq.s32.totalorder %s20, 0
      %p55 = por %p53, %p54
      %p56 = scmp.ne.s32.totalorder %s42, %s43
      %p57 = scmp.eq.s32.totalorder %s21, 31
      %p58 = por %p56, %p57
      %p60 = scmp.ne.s32.totalorder %s43, %s59
      %p61 = scmp.eq.s32.totalorder %s21, 0
      %p62 = por %p60, %p61
      %s63 = ssub.s32 %s22, %s34
      %p64 = scmp.eq.s32.totalorder %s63, 0
      %s66 = sadd.s32 %s65, 1
      %s67 = scalar_select %p64, %s65, %s66
      %p70 = pneg %p64
      %p71 = scmp.eq.s32.totalorder %s15, 31
      %p72 = por %p70, %p71
      %p73 = scmp.ne.s32.totalorder %s65, %s68
      %p74 = scmp.eq.s32.totalorder %s15, 0
      %p75 = por %p73, %p74
      %p76 = scmp.ne.s32.totalorder %s65, %s68
      %p77 = scmp.eq.s32.totalorder %s20, 31
      %p78 = por %p76, %p77
      %p79 = scmp.ne.s32.totalorder %s68, %s69
      %p80 = scmp.eq.s32.totalorder %s20, 0
      %p81 = por %p79, %p80
      %p82 = scmp.ne.s32.totalorder %s68, %s69
      %p83 = scmp.eq.s32.totalorder %s21, 31
      %p84 = por %p82, %p83
      %p86 = scmp.ne.s32.totalorder %s69, %s85
      %p87 = scmp.eq.s32.totalorder %s21, 0
      %p88 = por %p86, %p87
      %s89 = ssub.s32 %s22, %s34
      %p90 = scmp.eq.s32.totalorder %s89, 0
      %s92 = sadd.s32 %s91, 1
      %s93 = scalar_select %p90, %s91, %s92
      %p96 = pneg %p90
      %p97 = scmp.eq.s32.totalorder %s15, 31
      %p98 = por %p96, %p97
      %p99 = scmp.ne.s32.totalorder %s91, %s94
      %p100 = scmp.eq.s32.totalorder %s15, 0
      %p101 = por %p99, %p100
      %p102 = scmp.ne.s32.totalorder %s91, %s94
      %p103 = scmp.eq.s32.totalorder %s20, 31
      %p104 = por %p102, %p103
      %p105 = scmp.ne.s32.totalorder %s94, %s95
      %p106 = scmp.eq.s32.totalorder %s20, 0
      %p107 = por %p105, %p106
      %p108 = scmp.ne.s32.totalorder %s94, %s95
      %p109 = scmp.eq.s32.totalorder %s21, 31
      %p110 = por %p108, %p109
      %p112 = scmp.ne.s32.totalorder %s95, %s111
      %p113 = scmp.eq.s32.totalorder %s21, 0
      %p114 = por %p112, %p113
      %s115 = ssub.s32 %s22, %s34
      %s116 = ssub.s32 %s23, %s30
      %s117 = sor.u32 %s115, %s116
      %p118 = scmp.eq.s32.totalorder %s117, 0
      %s120 = sadd.s32 %s119, 1
      %s121 = scalar_select %p118, %s119, %s120
      %p124 = pneg %p118
      %p125 = scmp.eq.s32.totalorder %s15, 31
      %p126 = por %p124, %p125
      %p127 = scmp.ne.s32.totalorder %s119, %s122
      %p128 = scmp.eq.s32.totalorder %s15, 0
      %p129 = por %p127, %p128
      %p130 = scmp.ne.s32.totalorder %s119, %s122
      %p131 = scmp.eq.s32.totalorder %s20, 31
      %p132 = por %p130, %p131
      %p133 = scmp.ne.s32.totalorder %s122, %s123
      %p134 = scmp.eq.s32.totalorder %s20, 0
      %p135 = por %p133, %p134
      %p136 = scmp.ne.s32.totalorder %s122, %s123
      %p137 = scmp.eq.s32.totalorder %s21, 31
      %p138 = por %p136, %p137
      %p140 = scmp.ne.s32.totalorder %s123, %s139
      %p141 = scmp.eq.s32.totalorder %s21, 0
      %p142 = por %p140, %p141
      %s143 = ssub.s32 %s22, %s34
      %s144 = ssub.s32 %s23, %s30
      %s145 = sor.u32 %s143, %s144
      %p146 = scmp.eq.s32.totalorder %s145, 0
      %s148 = sadd.s32 %s147, 1
      %s149 = scalar_select %p146, %s147, %s148
      %p152 = pneg %p146
      %p153 = scmp.eq.s32.totalorder %s15, 31
      %p154 = por %p152, %p153
      %p155 = scmp.ne.s32.totalorder %s147, %s150
      %p156 = scmp.eq.s32.totalorder %s15, 0
      %p157 = por %p155, %p156
      %p158 = scmp.ne.s32.totalorder %s147, %s150
      %p159 = scmp.eq.s32.totalorder %s20, 31
      %p160 = por %p158, %p159
      %p161 = scmp.ne.s32.totalorder %s150, %s151
      %p162 = scmp.eq.s32.totalorder %s20, 0
      %p163 = por %p161, %p162
      %p164 = scmp.ne.s32.totalorder %s150, %s151
      %p165 = scmp.eq.s32.totalorder %s21, 31
      %p166 = por %p164, %p165
      %p168 = scmp.ne.s32.totalorder %s151, %s167
      %p169 = scmp.eq.s32.totalorder %s21, 0
      %p170 = por %p168, %p169
      %s171 = ssub.s32 %s22, %s34
      %s172 = ssub.s32 %s23, %s30
      %s173 = sor.u32 %s171, %s172
      %p174 = scmp.eq.s32.totalorder %s173, 0
      %s176 = sadd.s32 %s175, 1
      %s177 = scalar_select %p174, %s175, %s176
      %p180 = pneg %p174
      %p181 = scmp.eq.s32.totalorder %s15, 31
      %p182 = por %p180, %p181
      %p183 = scmp.ne.s32.totalorder %s175, %s178
      %p184 = scmp.eq.s32.totalorder %s15, 0
      %p185 = por %p183, %p184
      %p186 = scmp.ne.s32.totalorder %s175, %s178
      %p187 = scmp.eq.s32.totalorder %s20, 31
      %p188 = por %p186, %p187
      %p189 = scmp.ne.s32.totalorder %s178, %s179
      %p190 = scmp.eq.s32.totalorder %s20, 0
      %p191 = por %p189, %p190
      %p192 = scmp.ne.s32.totalorder %s178, %s179
      %p193 = scmp.eq.s32.totalorder %s21, 31
      %p194 = por %p192, %p193
      %p196 = scmp.ne.s32.totalorder %s179, %s195
      %p197 = scmp.eq.s32.totalorder %s21, 0
      %p198 = por %p196, %p197
      %p199 = scmp.le.s32.totalorder 1, %s15
      %p200 = scmp.lt.s32.totalorder %s15, 33
      %p201 = pnand %p199, %p200
      %p202 = pneg %p201
      // Predicated region
      $region9: #{tpu_custom_call.1} parent=5 // pred_check
        _
      $region10: #{tpu_custom_call.1} parent=5 // pred_check_branch
        %204 = sbr.rel (%p201) target = $region12
      $region11: #{tpu_custom_call.1} parent=5 // pred_region
        %s205 = ssub.s32 %s15, 1
      $region12: #{tpu_custom_call.1} parent=5 // pred_fallthru
        _
      %p206 = scmp.lt.s32.totalorder %s15, 32
      // Predicated region
      $region13: #{tpu_custom_call.1} parent=5 // pred_check
        %p207 = pneg %p206
      $region14: #{tpu_custom_call.1} parent=5 // pred_check_branch
        %209 = sbr.rel (%p207) target = $region16
      $region15: #{tpu_custom_call.1} parent=5 // pred_region
        // Predicated region
        $region17: #{tpu_custom_call.1} parent=15 // pred_check
          %p210 = pneg %p49
        $region18: #{tpu_custom_call.1} parent=15 // pred_check_branch
          %212 = sbr.rel (%p210) target = $region20
        $region19: #{tpu_custom_call.1} parent=15 // pred_region
          %s213 = smul.u32 4, %s23
          %p214 = scmp.lt.s32.totalorder %s22, 7
          %s215 = scalar_select %p214, %s22, 7
          %p216 = scmp.lt.s32.totalorder %s213, 15
          %s217 = scalar_select %p216, %s213, 15
          %s218 = smul.addr %s215, 16
          %s219 = sadd.s32 %s217, %s218
          %s220 = smul.addr %s219, 8
          %s221 = scalar_lea.vmem %s0, %s220
          %s222 = smul.u32 4, %s23
        $region20: #{tpu_custom_call.1} parent=15 // pred_fallthru
          _
        // Predicated region
        $region21: #{tpu_custom_call.1} parent=15 // pred_check
          %p223 = pneg %p75
        $region22: #{tpu_custom_call.1} parent=15 // pred_check_branch
          %225 = sbr.rel (%p223) target = $region24
        $region23: #{tpu_custom_call.1} parent=15 // pred_region
          %p226 = scmp.lt.s32.totalorder %s22, 7
          %s227 = scalar_select %p226, %s22, 7
          %s228 = smul.addr %s227, 16
          %s229 = smul.addr %s228, 8
          %s230 = scalar_lea.vmem %s1, %s229
        $region24: #{tpu_custom_call.1} parent=15 // pred_fallthru
          _
        // Predicated region
        $region25: #{tpu_custom_call.1} parent=15 // pred_check
          %p231 = pneg %p101
        $region26: #{tpu_custom_call.1} parent=15 // pred_check_branch
          %233 = sbr.rel (%p231) target = $region28
        $region27: #{tpu_custom_call.1} parent=15 // pred_region
          %p234 = scmp.lt.s32.totalorder %s22, 7
          %s235 = scalar_select %p234, %s22, 7
          %s236 = smul.addr %s235, 16
          %s237 = smul.addr %s236, 8
          %s238 = scalar_lea.vmem %s2, %s237
        $region28: #{tpu_custom_call.1} parent=15 // pred_fallthru
          _
        // Predicated region
        $region29: #{tpu_custom_call.1} parent=15 // pred_check
          %p239 = pneg %p129
        $region30: #{tpu_custom_call.1} parent=15 // pred_check_branch
          %241 = sbr.rel (%p239) target = $region32
        $region31: #{tpu_custom_call.1} parent=15 // pred_region
          %p242 = scmp.lt.s32.totalorder %s22, 7
          %s243 = scalar_select %p242, %s22, 7
          %p244 = scmp.lt.s32.totalorder %s23, 3
          %s245 = scalar_select %p244, %s23, 3
          %s246 = smul.addr %s243, 4
          %s247 = sadd.s32 %s245, %s246
          %s248 = smul.addr %s247, 8
          %s249 = scalar_lea.vmem %s3, %s248
        $region32: #{tpu_custom_call.1} parent=15 // pred_fallthru
          _
      $region16: #{tpu_custom_call.1} parent=5 // pred_fallthru
        _
      %p250 = scmp.le.s32.totalorder 1, %s15
      %p251 = scmp.lt.s32.totalorder %s15, 33
      %p252 = pnand %p250, %p251
      %p253 = pneg %p252
      // Predicated region
      $region33: #{tpu_custom_call.1} parent=5 // pred_check
        _
      $region34: #{tpu_custom_call.1} parent=5 // pred_check_branch
        %255 = sbr.rel (%p252) target = $region36
      $region35: #{tpu_custom_call.1} parent=5 // pred_region
        %s256 = ssub.s32 %s15, 1
        %s257 = smul.u32 4, %s25
        %p258 = scmp.lt.s32.totalorder %s24, 7
        %s259 = scalar_select %p258, %s24, 7
        %p260 = scmp.lt.s32.totalorder %s257, 15
        %s261 = scalar_select %p260, %s257, 15
        %s262 = smul.addr %s259, 16
        %s263 = sadd.s32 %s261, %s262
        %s264 = smul.addr %s263, 8
        %s265 = scalar_lea.vmem %s0, %s264
        %p266 = pneg %p55
        %p267 = pneg %p52
        %p268 = scmp.lt.s32.totalorder %s24, 7
        %s269 = scalar_select %p268, %s24, 7
        %s270 = smul.addr %s269, 16
        %s271 = smul.addr %s270, 8
        %s272 = scalar_lea.vmem %s1, %s271
        %p273 = pneg %p81
        %p274 = pneg %p78
        %p275 = scmp.lt.s32.totalorder %s24, 7
        %s276 = scalar_select %p275, %s24, 7
        %s277 = smul.addr %s276, 16
        %s278 = smul.addr %s277, 8
        %s279 = scalar_lea.vmem %s2, %s278
        %p280 = pneg %p107
        %p281 = pneg %p104
        %p282 = scmp.lt.s32.totalorder %s24, 7
        %s283 = scalar_select %p282, %s24, 7
        %p284 = scmp.lt.s32.totalorder %s25, 3
        %s285 = scalar_select %p284, %s25, 3
        %s286 = smul.addr %s283, 4
        %s287 = sadd.s32 %s285, %s286
        %s288 = smul.addr %s287, 8
        %s289 = scalar_lea.vmem %s3, %s288
        %p290 = pneg %p135
        %p291 = pneg %p132
        %p292 = pneg %p163
        %p293 = pneg %p160
        %s294 = smul.u32 4, %s25
        %p295 = scmp.lt.s32.totalorder %s24, 7
        %s296 = scalar_select %p295, %s24, 7
        %p297 = scmp.lt.s32.totalorder %s294, 15
        %s298 = scalar_select %p297, %s294, 15
        %s299 = smul.addr %s296, 16
        %s300 = sadd.s32 %s298, %s299
        %s301 = smul.addr %s300, 8
        %s302 = scalar_lea.vmem %s4, %s301
        %p303 = pneg %p191
        %p304 = pneg %p188
        %s305 = sand.u32 %s178, 1
        %s306 = scalar_lea.sflag [#allocation3], %s305
        %s307 = sand.u32 %s178, 1
        %s308 = smul.addr %s307, 32
        %s309 = scalar_lea.vmem [#allocation2], %s308
        %s310 = smul.u32 4, %s25
        %p311 = scmp.lt.s32.totalorder %s24, 7
        %s312 = scalar_select %p311, %s24, 7
        %p313 = scmp.lt.s32.totalorder %s310, 15
        %s314 = scalar_select %p313, %s310, 15
        %s315 = smul.addr %s312, 16
        %s316 = sadd.s32 %s314, %s315
        %s317 = smul.addr %s316, 8
        %s318 = scalar_lea.vmem %s0, %s317
        %s319 = smul.u32 4, %s25
        %p320 = scmp.lt.s32.totalorder %s24, 7
        %s321 = scalar_select %p320, %s24, 7
        %s322 = smul.addr %s321, 16
        %s323 = smul.addr %s322, 8
        %s324 = scalar_lea.vmem %s1, %s323
        %p325 = scmp.lt.s32.totalorder %s24, 7
        %s326 = scalar_select %p325, %s24, 7
        %s327 = smul.addr %s326, 16
        %s328 = smul.addr %s327, 8
        %s329 = scalar_lea.vmem %s2, %s328
        %p330 = scmp.lt.s32.totalorder %s24, 7
        %s331 = scalar_select %p330, %s24, 7
        %p332 = scmp.lt.s32.totalorder %s25, 3
        %s333 = scalar_select %p332, %s25, 3
        %s334 = smul.addr %s331, 4
        %s335 = sadd.s32 %s333, %s334
        %s336 = smul.addr %s335, 8
        %s337 = scalar_lea.vmem %s3, %s336
        %s338 = smul.u32 4, %s25
        %p339 = scmp.lt.s32.totalorder %s24, 7
        %s340 = scalar_select %p339, %s24, 7
        %p341 = scmp.lt.s32.totalorder %s338, 15
        %s342 = scalar_select %p341, %s338, 15
        %s343 = smul.addr %s340, 16
        %s344 = sadd.s32 %s342, %s343
        %s345 = smul.addr %s344, 8
        %s346 = scalar_lea.vmem %s4, %s345
        %s347 = smul.u32 4, %s25
        %s348 = smul.u32 4, %s25
        %v351 = vld [vmem:[%s318] sm:$0xff]
        %v352 = vld [vmem:[%s318 + $0x8] sm:$0xff]
        %v353 = vld [vmem:[%s318 + $0x10] sm:$0xff]
        %v354 = vld [vmem:[%s318 + $0x18] sm:$0xff]
        %v355 = vld [vmem:[%s324] sm:$0xff]
        %v356 = vld [vmem:[%s324 + $0x8] sm:$0xff]
        %v357 = vld [vmem:[%s324 + $0x10] sm:$0xff]
        %v358 = vld [vmem:[%s324 + $0x18] sm:$0xff]
        %v359 = vld [vmem:[%s324 + $0x20] sm:$0xff]
        %v360 = vld [vmem:[%s324 + $0x28] sm:$0xff]
        %v361 = vld [vmem:[%s324 + $0x30] sm:$0xff]
        %v362 = vld [vmem:[%s324 + $0x38] sm:$0xff]
        %v363 = vld [vmem:[%s324 + $0x40] sm:$0xff]
        %v364 = vld [vmem:[%s324 + $0x48] sm:$0xff]
        %v365 = vld [vmem:[%s324 + $0x50] sm:$0xff]
        %v366 = vld [vmem:[%s324 + $0x58] sm:$0xff]
        %v367 = vld [vmem:[%s324 + $0x60] sm:$0xff]
        %v368 = vld [vmem:[%s324 + $0x68] sm:$0xff]
        %v369 = vld [vmem:[%s324 + $0x70] sm:$0xff]
        %v370 = vld [vmem:[%s324 + $0x78] sm:$0xff]
        %v371 = vld [vmem:[%s329] sm:$0xff]
        %v372 = vld [vmem:[%s329 + $0x8] sm:$0xff]
        %v373 = vld [vmem:[%s329 + $0x10] sm:$0xff]
        %v374 = vld [vmem:[%s329 + $0x18] sm:$0xff]
        %v375 = vld [vmem:[%s329 + $0x20] sm:$0xff]
        %v376 = vld [vmem:[%s329 + $0x28] sm:$0xff]
        %v377 = vld [vmem:[%s329 + $0x30] sm:$0xff]
        %v378 = vld [vmem:[%s329 + $0x38] sm:$0xff]
        %v379 = vld [vmem:[%s329 + $0x40] sm:$0xff]
        %v380 = vld [vmem:[%s329 + $0x48] sm:$0xff]
        %v381 = vld [vmem:[%s329 + $0x50] sm:$0xff]
        %v382 = vld [vmem:[%s329 + $0x58] sm:$0xff]
        %v383 = vld [vmem:[%s329 + $0x60] sm:$0xff]
        %v384 = vld [vmem:[%s329 + $0x68] sm:$0xff]
        %v385 = vld [vmem:[%s329 + $0x70] sm:$0xff]
        %v386 = vld [vmem:[%s329 + $0x78] sm:$0xff]
        %v387 = vmul.f32 %v351, 0.25
        %v388 = vmul.f32 %v352, 0.25
        %v389 = vmul.f32 %v353, 0.25
        %v390 = vmul.f32 %v354, 0.25
        %vm391 = vcmask 523264
        %v393 = vsel %vm391, %v387, 0
        %v396 = vsel %vm391, %v388, 0
        %v399 = vsel %vm391, %v389, 0
        %v402 = vsel %vm391, %v390, 0
        %v405 = vsel %vm391, %v355, 0
        %v408 = vsel %vm391, %v356, 0
        %v411 = vsel %vm391, %v357, 0
        %v414 = vsel %vm391, %v358, 0
        %v417 = vsel %vm391, %v359, 0
        %v420 = vsel %vm391, %v360, 0
        %v423 = vsel %vm391, %v361, 0
        %v426 = vsel %vm391, %v362, 0
        %v429 = vsel %vm391, %v363, 0
        %v432 = vsel %vm391, %v364, 0
        %v435 = vsel %vm391, %v365, 0
        %v438 = vsel %vm391, %v366, 0
        %v441 = vsel %vm391, %v367, 0
        %v444 = vsel %vm391, %v368, 0
        %v447 = vsel %vm391, %v369, 0
        %v450 = vsel %vm391, %v370, 0
        %452 = vmatprep.subr.mxu0 0.0
        %453 = vmatpush1.xpose.msra.mxu0 %v450
        %454 = vmatprep.subr.mxu0 0.0
        %455 = vmatpush1.xpose.msra.mxu0 %v447
        %456 = vmatprep.subr.mxu0 0.0
        %457 = vmatpush1.xpose.msra.mxu0 %v444
        %458 = vmatprep.subr.mxu0 0.0
        %459 = vmatpush1.xpose.msra.mxu0 %v441
        %460 = vmatprep.subr.mxu0 0.0
        %461 = vmatpush1.xpose.msra.mxu0 %v438
        %462 = vmatprep.subr.mxu0 0.0
        %463 = vmatpush1.xpose.msra.mxu0 %v435
        %464 = vmatprep.subr.mxu0 0.0
        %465 = vmatpush1.xpose.msra.mxu0 %v432
        %466 = vmatprep.subr.mxu0 0.0
        %467 = vmatpush1.xpose.msra.mxu0 %v429
        %468 = vmatprep.subr.mxu0 0.0
        %469 = vmatpush1.xpose.msra.mxu0 %v426
        %470 = vmatprep.subr.mxu0 0.0
        %471 = vmatpush1.xpose.msra.mxu0 %v423
        %472 = vmatprep.subr.mxu0 0.0
        %473 = vmatpush1.xpose.msra.mxu0 %v420
        %474 = vmatprep.subr.mxu0 0.0
        %475 = vmatpush1.xpose.msra.mxu0 %v417
        %476 = vmatprep.subr.mxu0 0.0
        %477 = vmatpush1.xpose.msra.mxu0 %v414
        %478 = vmatprep.subr.mxu0 0.0
        %479 = vmatpush1.xpose.msra.mxu0 %v411
        %480 = vmatprep.subr.mxu0 0.0
        %481 = vmatpush1.xpose.msra.mxu0 %v408
        %482 = vmatprep.subr.mxu0 0.0
        %483 = vmatpush1.xpose.msra.mxu0 %v405
        %484 = vmatprep.subr.mxu0 0.0
        %485 = vmatpush2.xpose.msra.mxu0 0.0
        %486 = vmatprep.subr.mxu0 0.0
        %487 = vmatpush2.xpose.msra.mxu0 0.0
        %488 = vmatprep.subr.mxu0 0.0
        %489 = vmatpush2.xpose.msra.mxu0 0.0
        %490 = vmatprep.subr.mxu0 0.0
        %491 = vmatpush2.xpose.msra.mxu0 0.0
        %492 = vmatprep.subr.mxu0 0.0
        %493 = vmatpush2.xpose.msra.mxu0 0.0
        %494 = vmatprep.subr.mxu0 0.0
        %495 = vmatpush2.xpose.msra.mxu0 0.0
        %496 = vmatprep.subr.mxu0 0.0
        %497 = vmatpush2.xpose.msra.mxu0 0.0
        %498 = vmatprep.subr.mxu0 0.0
        %499 = vmatpush2.xpose.msra.mxu0 0.0
        %500 = vmatprep.subr.mxu0 0.0
        %501 = vmatpush2.xpose.msra.mxu0 0.0
        %502 = vmatprep.subr.mxu0 0.0
        %503 = vmatpush2.xpose.msra.mxu0 0.0
        %504 = vmatprep.subr.mxu0 0.0
        %505 = vmatpush2.xpose.msra.mxu0 0.0
        %506 = vmatprep.subr.mxu0 0.0
        %507 = vmatpush2.xpose.msra.mxu0 0.0
        %508 = vmatprep.subr.mxu0 0.0
        %509 = vmatpush2.xpose.msra.mxu0 0.0
        %510 = vmatprep.subr.mxu0 0.0
        %511 = vmatpush2.xpose.msra.mxu0 0.0
        %512 = vmatprep.subr.mxu0 0.0
        %513 = vmatpush2.xpose.msra.mxu0 0.0
        %514 = vmatprep.subr.mxu0 0.0
        %515 = vmatpush2.xpose.msra.mxu0 0.0
        %516 = vmatprep.mubr.f32.mxu0 0.0
        %517 = vmatmul.mubr.f32.gmra.mxu0 %v393
        %v518 = vpop.f32.mrf.mxu0
        %v519 = vadd.f32 0.0, %v518
        %v520 = vpop.f32.mrf.mxu0
        %521 = vmatprep.mubr.f32.mxu0 0.0
        %522 = vmatmul.mubr.f32.gmra.mxu0 %v396
        %v523 = vpop.f32.mrf.mxu0
        %v524 = vadd.f32 0.0, %v523
        %v525 = vpop.f32.mrf.mxu0
        %526 = vmatprep.mubr.f32.mxu0 0.0
        %527 = vmatmul.mubr.f32.gmra.mxu0 %v399
        %v528 = vpop.f32.mrf.mxu0
        %v529 = vadd.f32 0.0, %v528
        %v530 = vpop.f32.mrf.mxu0
        %531 = vmatprep.mubr.f32.mxu0 0.0
        %532 = vmatmul.mubr.f32.gmra.mxu0 %v402
        %v533 = vpop.f32.mrf.mxu0
        %v534 = vadd.f32 0.0, %v533
        %v535 = vpop.f32.mrf.mxu0
        %536 = vdwg.mxu0
        %v537 = vld [vmem:[%s337] sm:$0xff]
        %vm538 = vnez %v537
        %v539 = vsel %vm538, 16843009, 0
        %v540 = vunpack.c.0.s8 %v539
        %v541 = vunpack.c.1.s8 %v539
        %v542 = vunpack.c.2.s8 %v539
        %v543 = vunpack.c.3.s8 %v539
        %v544 = vpack.c.b16 %v540, %v540
        %v545 = vpack.c.b8 %v544, %v544
        %v546 = vpack.c.b16 %v541, %v541
        %v547 = vpack.c.b8 %v546, %v546
        %v548 = vpack.c.b16 %v542, %v542
        %v549 = vpack.c.b8 %v548, %v548
        %v550 = vpack.c.b16 %v543, %v543
        %v551 = vpack.c.b8 %v550, %v550
        %vm552 = vnez %v545
        %vm553 = vnez %v547
        %vm554 = vnez %v549
        %vm555 = vnez %v551
        %v556 = vsel %vm552, 16843009, 0
        %v557 = vsel %vm553, 16843009, 0
        %v558 = vsel %vm554, 16843009, 0
        %v559 = vsel %vm555, 16843009, 0
        %v560 = vunpack.c.0.s8 %v556
        %v561 = vunpack.c.0.s8 %v557
        %v562 = vunpack.c.0.s8 %v558
        %v563 = vunpack.c.0.s8 %v559
        %vm564 = vcmp.ne.s32.totalorder %v560, 0
        %vm565 = vcmp.ne.s32.totalorder %v561, 0
        %vm566 = vcmp.ne.s32.totalorder %v562, 0
        %vm567 = vcmp.ne.s32.totalorder %v563, 0
        %v568 = vsel %vm564, -1e+30, %v519
        %v569 = vsel %vm565, -1e+30, %v524
        %v570 = vsel %vm566, -1e+30, %v529
        %v571 = vsel %vm567, -1e+30, %v534
        %572 = vmax.xlane.f32.xlu0 %v568
        %v573 = vpop.xlane.xlu0 %572
        %574 = vmax.xlane.f32.xlu0 %v569
        %v575 = vpop.xlane.xlu0 %574
        %576 = vmax.xlane.f32.xlu0 %v570
        %v577 = vpop.xlane.xlu0 %576
        %578 = vmax.xlane.f32.xlu0 %v571
        %v579 = vpop.xlane.xlu0 %578
        %v580 = vsub.f32 %v568, %v573
        %v581 = vsub.f32 %v569, %v575
        %v582 = vsub.f32 %v570, %v577
        %v583 = vsub.f32 %v571, %v579
        %v584 = vmul.f32 %v580, 1.442695
        %v585 = vpow.pop %v584
        %v586 = vmul.f32 %v581, 1.442695
        %v587 = vpow.pop %v586
        %v588 = vmul.f32 %v582, 1.442695
        %v589 = vpow.pop %v588
        %v590 = vmul.f32 %v583, 1.442695
        %v591 = vpow.pop %v590
        %v592 = vsel %vm564, 0.0, %v585
        %v593 = vsel %vm565, 0.0, %v587
        %v594 = vsel %vm566, 0.0, %v589
        %v595 = vsel %vm567, 0.0, %v591
        %596 = vadd.xlane.f32.xlu0 %v592
        %v597 = vpop.xlane.xlu0 %596
        %598 = vadd.xlane.f32.xlu0 %v593
        %v599 = vpop.xlane.xlu0 %598
        %600 = vadd.xlane.f32.xlu0 %v594
        %v601 = vpop.xlane.xlu0 %600
        %602 = vadd.xlane.f32.xlu0 %v595
        %v603 = vpop.xlane.xlu0 %602
        %v604 = vrcp.pop %v597
        %v605 = vrcp.pop %v599
        %v606 = vrcp.pop %v601
        %v607 = vrcp.pop %v603
        %v608 = vmul.f32 %v592, %v604
        %v609 = vmul.f32 %v593, %v605
        %v610 = vmul.f32 %v594, %v606
        %v611 = vmul.f32 %v595, %v607
        %612 = vst [vmem:[%s309] sm:$0xff] %v608
        %613 = vst [vmem:[%s309 + $0x8] sm:$0xff] %v609
        %614 = vst [vmem:[%s309 + $0x10] sm:$0xff] %v610
        %615 = vst [vmem:[%s309 + $0x18] sm:$0xff] %v611
        %616 = vmatprep.subr.mxu0 0.0
        %617 = vmatpush1.msra.mxu0 %v386
        %618 = vmatprep.subr.mxu0 0.0
        %619 = vmatpush1.msra.mxu0 %v385
        %620 = vmatprep.subr.mxu0 0.0
        %621 = vmatpush1.msra.mxu0 %v384
        %622 = vmatprep.subr.mxu0 0.0
        %623 = vmatpush1.msra.mxu0 %v383
        %624 = vmatprep.subr.mxu0 0.0
        %625 = vmatpush1.msra.mxu0 %v382
        %626 = vmatprep.subr.mxu0 0.0
        %627 = vmatpush1.msra.mxu0 %v381
        %628 = vmatprep.subr.mxu0 0.0
        %629 = vmatpush1.msra.mxu0 %v380
        %630 = vmatprep.subr.mxu0 0.0
        %631 = vmatpush1.msra.mxu0 %v379
        %632 = vmatprep.subr.mxu0 0.0
        %633 = vmatpush1.msra.mxu0 %v378
        %634 = vmatprep.subr.mxu0 0.0
        %635 = vmatpush1.msra.mxu0 %v377
        %636 = vmatprep.subr.mxu0 0.0
        %637 = vmatpush1.msra.mxu0 %v376
        %638 = vmatprep.subr.mxu0 0.0
        %639 = vmatpush1.msra.mxu0 %v375
        %640 = vmatprep.subr.mxu0 0.0
        %641 = vmatpush1.msra.mxu0 %v374
        %642 = vmatprep.subr.mxu0 0.0
        %643 = vmatpush1.msra.mxu0 %v373
        %644 = vmatprep.subr.mxu0 0.0
        %645 = vmatpush1.msra.mxu0 %v372
        %646 = vmatprep.subr.mxu0 0.0
        %647 = vmatpush1.msra.mxu0 %v371
        %648 = vmatprep.subr.mxu0 0.0
        %649 = vmatpush2.msra.mxu0 0.0
        %650 = vmatprep.subr.mxu0 0.0
        %651 = vmatpush2.msra.mxu0 0.0
        %652 = vmatprep.subr.mxu0 0.0
        %653 = vmatpush2.msra.mxu0 0.0
        %654 = vmatprep.subr.mxu0 0.0
        %655 = vmatpush2.msra.mxu0 0.0
        %656 = vmatprep.subr.mxu0 0.0
        %657 = vmatpush2.msra.mxu0 0.0
        %658 = vmatprep.subr.mxu0 0.0
        %659 = vmatpush2.msra.mxu0 0.0
        %660 = vmatprep.subr.mxu0 0.0
        %661 = vmatpush2.msra.mxu0 0.0
        %662 = vmatprep.subr.mxu0 0.0
        %663 = vmatpush2.msra.mxu0 0.0
        %664 = vmatprep.subr.mxu0 0.0
        %665 = vmatpush2.msra.mxu0 0.0
        %666 = vmatprep.subr.mxu0 0.0
        %667 = vmatpush2.msra.mxu0 0.0
        %668 = vmatprep.subr.mxu0 0.0
        %669 = vmatpush2.msra.mxu0 0.0
        %670 = vmatprep.subr.mxu0 0.0
        %671 = vmatpush2.msra.mxu0 0.0
        %672 = vmatprep.subr.mxu0 0.0
        %673 = vmatpush2.msra.mxu0 0.0
        %674 = vmatprep.subr.mxu0 0.0
        %675 = vmatpush2.msra.mxu0 0.0
        %676 = vmatprep.subr.mxu0 0.0
        %677 = vmatpush2.msra.mxu0 0.0
        %678 = vmatprep.subr.mxu0 0.0
        %679 = vmatpush2.msra.mxu0 0.0
        %680 = vmatprep.mubr.f32.mxu0 0.0
        %681 = vmatmul.mubr.f32.gmra.mxu0 %v608
        %v682 = vpop.f32.mrf.mxu0
        %v683 = vadd.f32 0.0, %v682
        %v684 = vpop.f32.mrf.mxu0
        %685 = vmatprep.mubr.f32.mxu0 0.0
        %686 = vmatmul.mubr.f32.gmra.mxu0 %v609
        %v687 = vpop.f32.mrf.mxu0
        %v688 = vadd.f32 0.0, %v687
        %v689 = vpop.f32.mrf.mxu0
        %690 = vmatprep.mubr.f32.mxu0 0.0
        %691 = vmatmul.mubr.f32.gmra.mxu0 %v610
        %v692 = vpop.f32.mrf.mxu0
        %v693 = vadd.f32 0.0, %v692
        %v694 = vpop.f32.mrf.mxu0
        %695 = vmatprep.mubr.f32.mxu0 0.0
        %696 = vmatmul.mubr.f32.gmra.mxu0 %v611
        %v697 = vpop.f32.mrf.mxu0
        %v698 = vadd.f32 0.0, %v697
        %v699 = vpop.f32.mrf.mxu0
        %700 = vdwg.mxu0
        %701 = vst.msk [vmem:[%s346] sm:$0xff] %vm391, %v683
        %702 = vst.msk [vmem:[%s346 + $0x8] sm:$0xff] %vm391, %v688
        %703 = vst.msk [vmem:[%s346 + $0x10] sm:$0xff] %vm391, %v693
        %704 = vst.msk [vmem:[%s346 + $0x18] sm:$0xff] %vm391, %v698
        %s705 = smul.u32 4, %s25
        %p706 = scmp.lt.s32.totalorder %s24, 7
        %s707 = scalar_select %p706, %s24, 7
        %p708 = scmp.lt.s32.totalorder %s705, 15
        %s709 = scalar_select %p708, %s705, 15
        %s710 = smul.addr %s707, 16
        %s711 = sadd.s32 %s709, %s710
        %s712 = smul.addr %s711, 8
        %s713 = scalar_lea.vmem %s4, %s712
        %s714 = sand.u32 %s178, 1
        %s715 = scalar_lea.sflag [#allocation3], %s714
        %s716 = sand.u32 %s178, 1
        %s717 = smul.addr %s716, 32
        %s718 = scalar_lea.vmem [#allocation2], %s717
        // Predicated region
        $region37: #{tpu_custom_call.1} parent=35 // pred_check
          %p719 = pneg %p160
        $region38: #{tpu_custom_call.1} parent=35 // pred_check_branch
          %721 = sbr.rel (%p719) target = $region40
        $region39: #{tpu_custom_call.1} parent=35 // pred_region
          %s722 = smul.u32 4, %s25
        $region40: #{tpu_custom_call.1} parent=35 // pred_fallthru
          _
        // Predicated region
        $region41: #{tpu_custom_call.1} parent=35 // pred_check
          %p723 = pneg %p188
        $region42: #{tpu_custom_call.1} parent=35 // pred_check_branch
          %725 = sbr.rel (%p723) target = $region44
        $region43: #{tpu_custom_call.1} parent=35 // pred_region
          %s726 = smul.u32 4, %s25
          %s728 = ssub.s32 512, 512
          %729 = vsyncadd %s715, %s728
          %s730 = smul.addr %s24, 16
          %s731 = sadd.s32 %s726, %s730
          %s732 = smul.addr %s731, 128
          %s733 = scalar_lea.hbm %s5, %s732
          %s734 = sshll.u32 %s718, 4
          %s735 = int_to_ptr.vmem [resolvable:$true] %s734
          %740 = dma.vmem_to_hbm [thread:$0]  %s735, 512, %s733, %s715, 128, 128, 8
        $region44: #{tpu_custom_call.1} parent=35 // pred_fallthru
          _
      $region36: #{tpu_custom_call.1} parent=5 // pred_fallthru
        _
      %p741 = scmp.le.s32.totalorder 2, %s15
      // Predicated region
      $region45: #{tpu_custom_call.1} parent=5 // pred_check
        %p742 = pneg %p741
      $region46: #{tpu_custom_call.1} parent=5 // pred_check_branch
        %744 = sbr.rel (%p742) target = $region48
      $region47: #{tpu_custom_call.1} parent=5 // pred_region
        %s745 = ssub.s32 %s15, 2
        // Predicated region
        $region49: #{tpu_custom_call.1} parent=47 // pred_check
          %p746 = pneg %p166
        $region50: #{tpu_custom_call.1} parent=47 // pred_check_branch
          %748 = sbr.rel (%p746) target = $region52
        $region51: #{tpu_custom_call.1} parent=47 // pred_region
          %s749 = smul.u32 4, %s27
          %p750 = scmp.lt.s32.totalorder %s26, 7
          %s751 = scalar_select %p750, %s26, 7
          %p752 = scmp.lt.s32.totalorder %s749, 15
          %s753 = scalar_select %p752, %s749, 15
          %s754 = smul.addr %s751, 16
          %s755 = sadd.s32 %s753, %s754
          %s756 = smul.addr %s755, 8
          %s757 = scalar_lea.vmem %s4, %s756
        $region52: #{tpu_custom_call.1} parent=47 // pred_fallthru
          _
        // Predicated region
        $region53: #{tpu_custom_call.1} parent=47 // pred_check
          %p758 = pneg %p194
        $region54: #{tpu_custom_call.1} parent=47 // pred_check_branch
          %760 = sbr.rel (%p758) target = $region56
        $region55: #{tpu_custom_call.1} parent=47 // pred_region
          %s761 = sand.u32 %s179, 1
          %s762 = scalar_lea.sflag [#allocation3], %s761
          %s763 = sand.u32 %s179, 1
          %s764 = smul.addr %s763, 32
          %s765 = scalar_lea.vmem [#allocation2], %s764
          %766 = dma.done %s762, 512
        $region56: #{tpu_custom_call.1} parent=47 // pred_fallthru
          _
      $region48: #{tpu_custom_call.1} parent=5 // pred_fallthru
        _
    $region6: #{tpu_custom_call.1} parent=1 // loop_footer
      %s19 = sadd.s32 1, %s15
    $region7: #{tpu_custom_call.1} parent=1 // loop_footer_branch
      %14 = sbr.rel target = $region3
    $region8: #{tpu_custom_call.1} parent=1 // loop_exit
      _
    %767 = vsyncpa [#allocation3], 1
    %s768 = scalar_lea.sflag [#allocation3], 1
    %769 = vsyncpa %s768, 1

</llo_original>
